<compile_context>
chip_gen: v7x
topology: tpu7x:2x2x1
jax: 0.10.0
libtpu: 0.0.40
codegen_flags: <defaults>
</compile_context>

<pallas_src>
import functools

import jax
import jax.numpy as jnp
from jax.experimental import pallas as pl
from jax.experimental.pallas import tpu as pltpu

_MIB = 1024 * 1024


def _vmem_capacity_bytes() -> int:
    """Physical VMEM of the current TPU generation (fallback: v7x's 64 MiB)."""
    try:
        return int(pltpu.get_tpu_info().vmem_capacity_bytes)
    except Exception:
        return 64 * _MIB


def _round_up(x: int, m: int) -> int:
    return ((x + m - 1) // m) * m


def _choose_hw_tile(hw_pad: int, c: int, itemsize: int, vmem_budget: int,
                    max_hw_lanes=None) -> int:
    """Largest multiple-of-128 divisor of hw_pad whose double-buffered
    in+out footprint (~4*C*tile*itemsize) fits vmem_budget."""
    cap = vmem_budget // max(1, 4 * c * itemsize)
    cap = max(128, (cap // 128) * 128)
    if max_hw_lanes is not None:
        cap = min(cap, max(128, (max_hw_lanes // 128) * 128))
    cap = min(cap, hw_pad)
    tile = cap
    while hw_pad % tile != 0:
        tile -= 128
    return tile


def _sigmoid(z):
    # Explicit form (exp + reciprocal run on the EUP, always supported).
    return 1.0 / (1.0 + jnp.exp(-z))


def _fused_kernel(w1_ref, w2_ref, x_ref, o_ref, *, inv_hw):
    """Single pass per batch: pool -> MLP -> sigmoid -> gated multiply."""
    x = x_ref[0]                                                   # (C, HWp)
    s = jnp.sum(x, axis=-1, keepdims=True, dtype=jnp.float32)      # (C, 1)
    mean = s * inv_hw
    h = jnp.maximum(
        jnp.dot(w1_ref[...], mean, preferred_element_type=jnp.float32), 0.0)
    z = jnp.dot(w2_ref[...], h, preferred_element_type=jnp.float32)
    gate = _sigmoid(z).astype(o_ref.dtype)                         # (C, 1)
    o_ref[0] = x * gate


def _pool_kernel(x_ref, sum_ref):
    """Streaming global sum over HW tiles (f32 VMEM-resident accumulator)."""
    @pl.when(pl.program_id(1) == 0)
    def _():
        sum_ref[...] = jnp.zeros_like(sum_ref)
    sum_ref[0] += jnp.sum(x_ref[0], axis=-1, keepdims=True, dtype=jnp.float32)


def _apply_kernel(pooled_ref, w1_ref, w2_ref, x_ref, o_ref, gate_ref, *,
                  inv_hw):
    """Gate computed once per batch (t == 0) into VMEM scratch, then reused
    for every HW tile: out = x * gate."""
    @pl.when(pl.program_id(1) == 0)
    def _():
        mean = pooled_ref[0] * inv_hw                              # (C, 1) f32
        h = jnp.maximum(
            jnp.dot(w1_ref[...], mean, preferred_element_type=jnp.float32),
            0.0)
        z = jnp.dot(w2_ref[...], h, preferred_element_type=jnp.float32)
        gate_ref[0] = _sigmoid(z).astype(gate_ref.dtype)
    o_ref[0] = x_ref[0] * gate_ref[0]


def channel_attention(x, w1, w2, *, mode: str = "auto", max_hw_lanes=None):
    """x: (B, C, H, W); w1: (C_red, C); w2: (C, C_red). Returns (B, C, H, W).

    mode: "auto" (pick based on VMEM), "fused" (force single-pass),
          "streaming" (force two-kernel streaming path).
    """
    B, C, H, W = x.shape
    HW = H * W
    C_red = w1.shape[0]
    assert w1.shape == (C_red, C) and w2.shape == (C, C_red)

    itemsize = jnp.dtype(x.dtype).itemsize
    hw_pad = _round_up(HW, 128)

    x_flat = x.reshape(B, C, HW)
    if hw_pad != HW:
        # Zero-padding is sum-neutral for the pool (we divide by the true HW);
        # padded output lanes are sliced off below.
        x_flat = jnp.pad(x_flat, ((0, 0), (0, 0), (0, hw_pad - HW)))

    w1f = w1.astype(jnp.float32)
    w2f = w2.astype(jnp.float32)
    inv_hw = 1.0 / HW

    vmem_cap = _vmem_capacity_bytes()

    # Footprint of the fused per-batch kernel: double-buffered in+out blocks,
    # f32 working slack, weights, misc.
    block_bytes = C * hw_pad * itemsize
    fused_need = (4 * block_bytes + 2 * C * hw_pad * 4
                  + 4 * (w1f.size + w2f.size) + 2 * _MIB)
    use_fused = (mode == "fused") or (
        mode == "auto" and fused_need <= (3 * vmem_cap) // 4)

    if use_fused:
        out_flat = pl.pallas_call(
            functools.partial(_fused_kernel, inv_hw=inv_hw),
            out_shape=jax.ShapeDtypeStruct((B, C, hw_pad), x.dtype),
            grid_spec=pltpu.PrefetchScalarGridSpec(
                num_scalar_prefetch=0,
                grid=(B,),
                in_specs=[
                    pl.BlockSpec((C_red, C), lambda b: (0, 0)),
                    pl.BlockSpec((C, C_red), lambda b: (0, 0)),
                    pl.BlockSpec((1, C, hw_pad), lambda b: (b, 0, 0)),
                ],
                out_specs=pl.BlockSpec((1, C, hw_pad), lambda b: (b, 0, 0)),
            ),
            compiler_params=pltpu.CompilerParams(
                dimension_semantics=("parallel",),
                vmem_limit_bytes=min(vmem_cap, max(fused_need, 32 * _MIB))),
            cost_estimate=pl.CostEstimate(
                flops=2 * B * C * HW + 4 * B * C * C_red,
                transcendentals=B * C,
                bytes_accessed=2 * B * C * hw_pad * itemsize),
        )(w1f, w2f, x_flat)
    else:
        # ---- Streaming path: pool kernel + fused gate/apply kernel ----
        tile = _choose_hw_tile(hw_pad, C, itemsize, vmem_cap // 4,
                               max_hw_lanes)
        n_tiles = hw_pad // tile

        pool_need = 4 * C * tile * itemsize + 8 * C * 4 + 2 * _MIB
        pooled = pl.pallas_call(
            _pool_kernel,
            out_shape=jax.ShapeDtypeStruct((B, C, 1), jnp.float32),
            grid_spec=pltpu.PrefetchScalarGridSpec(
                num_scalar_prefetch=0,
                grid=(B, n_tiles),
                in_specs=[pl.BlockSpec((1, C, tile), lambda b, t: (b, 0, t))],
                out_specs=pl.BlockSpec((1, C, 1), lambda b, t: (b, 0, 0)),
            ),
            compiler_params=pltpu.CompilerParams(
                dimension_semantics=("parallel", "arbitrary"),
                vmem_limit_bytes=min(vmem_cap, max(pool_need, 32 * _MIB))),
            cost_estimate=pl.CostEstimate(
                flops=B * C * hw_pad,
                transcendentals=0,
                bytes_accessed=B * C * hw_pad * itemsize + B * C * 4),
        )(x_flat)

        apply_need = (4 * C * tile * itemsize + 4 * (w1f.size + w2f.size)
                      + 8 * C * itemsize + 2 * _MIB)
        out_flat = pl.pallas_call(
            functools.partial(_apply_kernel, inv_hw=inv_hw),
            out_shape=jax.ShapeDtypeStruct((B, C, hw_pad), x.dtype),
            grid_spec=pltpu.PrefetchScalarGridSpec(
                num_scalar_prefetch=0,
                grid=(B, n_tiles),
                in_specs=[
                    pl.BlockSpec((1, C, 1), lambda b, t: (b, 0, 0)),
                    pl.BlockSpec((C_red, C), lambda b, t: (0, 0)),
                    pl.BlockSpec((C, C_red), lambda b, t: (0, 0)),
                    pl.BlockSpec((1, C, tile), lambda b, t: (b, 0, t)),
                ],
                out_specs=pl.BlockSpec((1, C, tile), lambda b, t: (b, 0, t)),
                scratch_shapes=[pltpu.VMEM((1, C, 1), x.dtype)],
            ),
            compiler_params=pltpu.CompilerParams(
                dimension_semantics=("parallel", "arbitrary"),
                vmem_limit_bytes=min(vmem_cap, max(apply_need, 32 * _MIB))),
            cost_estimate=pl.CostEstimate(
                flops=B * C * hw_pad + 4 * B * C * C_red,
                transcendentals=B * C,
                bytes_accessed=2 * B * C * hw_pad * itemsize),
        )(pooled, w1f, w2f, x_flat)

    if hw_pad != HW:
        out_flat = out_flat[..., :HW]
    return out_flat.reshape(B, C, H, W)


def channel_attention_ref(x, w1, w2):
    """Pure-JAX reference (matches the PyTorch module)."""
    y = jnp.mean(x, axis=(2, 3))                       # (B, C)
    h = jnp.maximum(y @ w1.T, 0.0)                     # (B, C_red)
    z = h @ w2.T                                       # (B, C)
    gate = jax.nn.sigmoid(z)[:, :, None, None]         # (B, C, 1, 1)
    return x * gate


if __name__ == "__main__":
    B, C, H, W = 2, 64, 32, 32          # HW = 1024
    reduction = 8
    C_red = C // reduction

    key = jax.random.PRNGKey(0)
    kx, k1, k2 = jax.random.split(key, 3)
    x = jax.random.normal(kx, (B, C, H, W), dtype=jnp.float32)
    # Deterministic synthetic weights for the two bias-free 1x1 convs.
    w1 = jax.random.normal(k1, (C_red, C), dtype=jnp.float32) * 0.1
    w2 = jax.random.normal(k2, (C, C_red), dtype=jnp.float32) * 0.1

    ref = channel_attention_ref(x, w1, w2)

    # Fused single-pass path (auto would also pick this at these shapes).
    out_fused = jax.block_until_ready(channel_attention(x, w1, w2, mode="fused"))
    assert out_fused.shape == (B, C, H, W)
    err_f = float(jnp.max(jnp.abs(out_fused - ref)))
    assert jnp.allclose(out_fused, ref, atol=2e-5, rtol=2e-5), \
        f"fused max abs err {err_f}"

    # Streaming fallback path (forced small tile to exercise multi-tile grid).
    out_stream = jax.block_until_ready(
        channel_attention(x, w1, w2, mode="streaming", max_hw_lanes=256))
    err_s = float(jnp.max(jnp.abs(out_stream - ref)))
    assert jnp.allclose(out_stream, ref, atol=2e-5, rtol=2e-5), \
        f"streaming max abs err {err_s}"

    print("KERNEL_OK")
</pallas_src>

<mosaic_0001>
module attributes {stable_mosaic.version = 11 : i64} {
  func.func @_fused_kernel(%arg0: i32, %arg1: memref<8x64xf32, #tpu.memory_space<vmem>>, %arg2: memref<64x8xf32, #tpu.memory_space<vmem>>, %arg3: memref<1x64x1024xf32, #tpu.memory_space<vmem>>, %arg4: memref<1x64x1024xf32, #tpu.memory_space<vmem>>) attributes {dimension_semantics = [#tpu.dimension_semantics<parallel>], iteration_bounds = array<i64: 2>, scalar_prefetch = 0 : i64, scratch_operands = 0 : i64, tpu.core_type = #tpu.core_type<tc>, window_params = [{pipeline_mode = #tpu.pipeline_mode<synchronous>, transform_indices = @transform_0, window_bounds = array<i64: 8, 64>}, {pipeline_mode = #tpu.pipeline_mode<synchronous>, transform_indices = @transform_1, window_bounds = array<i64: 64, 8>}, {transform_indices = @transform_2, window_bounds = array<i64: 1, 64, 1024>}, {transform_indices = @transform_3, window_bounds = array<i64: 1, 64, 1024>}]} {
    %c0 = arith.constant 0 : index
    %c0_0 = arith.constant 0 : index
    %c0_1 = arith.constant 0 : index
    %0 = vector.load %arg3[%c0, %c0_0, %c0_1] : memref<1x64x1024xf32, #tpu.memory_space<vmem>>, vector<1x64x1024xf32>
    %1 = vector.shape_cast %0 : vector<1x64x1024xf32> to vector<64x1024xf32>
    %cst = arith.constant dense<0.000000e+00> : vector<64xf32>
    %2 = vector.multi_reduction <add>, %1, %cst [1] : vector<64x1024xf32> to vector<64xf32>
    %3 = vector.shape_cast %2 : vector<64xf32> to vector<64x1xf32>
    %cst_2 = arith.constant 9.765625E-4 : f32
    %4 = vector.broadcast %cst_2 : f32 to vector<64x1xf32>
    %5 = arith.mulf %3, %4 : vector<64x1xf32>
    %c0_3 = arith.constant 0 : index
    %c0_4 = arith.constant 0 : index
    %6 = vector.load %arg1[%c0_3, %c0_4] : memref<8x64xf32, #tpu.memory_space<vmem>>, vector<8x64xf32>
    %cst_5 = arith.constant dense<0.000000e+00> : vector<8x1xf32>
    %7 = tpu.matmul %6, %5, %cst_5 {dimension_numbers = #tpu.dot_dimension_numbers<[1], [0], [0], [1], [0, 0, 1, 1], [], []>} : vector<8x64xf32>, vector<64x1xf32>, vector<8x1xf32> -> vector<8x1xf32>
    %cst_6 = arith.constant 0.000000e+00 : f32
    %8 = vector.broadcast %cst_6 : f32 to vector<8x1xf32>
    %9 = arith.maximumf %7, %8 : vector<8x1xf32>
    %c0_7 = arith.constant 0 : index
    %c0_8 = arith.constant 0 : index
    %10 = vector.load %arg2[%c0_7, %c0_8] : memref<64x8xf32, #tpu.memory_space<vmem>>, vector<64x8xf32>
    %cst_9 = arith.constant dense<0.000000e+00> : vector<64x1xf32>
    %11 = tpu.matmul %10, %9, %cst_9 {dimension_numbers = #tpu.dot_dimension_numbers<[1], [0], [0], [1], [0, 0, 1, 1], [], []>} : vector<64x8xf32>, vector<8x1xf32>, vector<64x1xf32> -> vector<64x1xf32>
    %cst_10 = arith.constant 0.000000e+00 : f32
    %12 = vector.broadcast %cst_10 : f32 to vector<64x1xf32>
    %13 = arith.subf %12, %11 : vector<64x1xf32>
    %14 = math.exp %13 : vector<64x1xf32>
    %cst_11 = arith.constant 1.000000e+00 : f32
    %15 = vector.broadcast %cst_11 : f32 to vector<64x1xf32>
    %16 = arith.addf %15, %14 : vector<64x1xf32>
    %cst_12 = arith.constant 1.000000e+00 : f32
    %17 = vector.broadcast %cst_12 : f32 to vector<64x1xf32>
    %18 = arith.divf %17, %16 : vector<64x1xf32>
    %19 = vector.broadcast %18 : vector<64x1xf32> to vector<64x1024xf32>
    %20 = arith.mulf %1, %19 : vector<64x1024xf32>
    %c0_13 = arith.constant 0 : index
    %c0_14 = arith.constant 0 : index
    %c0_15 = arith.constant 0 : index
    %21 = vector.load %arg4[%c0_13, %c0_14, %c0_15] : memref<1x64x1024xf32, #tpu.memory_space<vmem>>, vector<1x64x1024xf32>
    %22 = vector.shape_cast %21 : vector<1x64x1024xf32> to vector<64x1024xf32>
    %23 = vector.shape_cast %20 : vector<64x1024xf32> to vector<1x64x1024xf32>
    tpu.vector_store %arg4[%c0_13, %c0_14, %c0_15], %23 {strides = array<i32>} : memref<1x64x1024xf32, #tpu.memory_space<vmem>>, vector<1x64x1024xf32>,
    return
  }
  func.func @transform_0(%arg0: i32) -> (i32, i32) {
    %c0_i32 = arith.constant 0 : i32
    %c0_i32_0 = arith.constant 0 : i32
    %c0_i32_1 = arith.constant 0 : i32
    return %c0_i32, %c0_i32_0 : i32, i32
  }
  func.func @transform_1(%arg0: i32) -> (i32, i32) {
    %c0_i32 = arith.constant 0 : i32
    %c0_i32_0 = arith.constant 0 : i32
    %c0_i32_1 = arith.constant 0 : i32
    return %c0_i32, %c0_i32_0 : i32, i32
  }
  func.func @transform_2(%arg0: i32) -> (i32, i32, i32) {
    %c0_i32 = arith.constant 0 : i32
    %c0_i32_0 = arith.constant 0 : i32
    %c0_i32_1 = arith.constant 0 : i32
    return %arg0, %c0_i32, %c0_i32_0 : i32, i32, i32
  }
  func.func @transform_3(%arg0: i32) -> (i32, i32, i32) {
    %c0_i32 = arith.constant 0 : i32
    %c0_i32_0 = arith.constant 0 : i32
    %c0_i32_1 = arith.constant 0 : i32
    return %arg0, %c0_i32, %c0_i32_0 : i32, i32, i32
  }
}

</mosaic_0001>

<llo_original>
// kernel: tpu_custom_call.1
$region0: #{tpu_custom_call.1}
  #allocation0 [shape = 'u32[]', space=smem, size = 0x4, offset = 0x4, fixed_abs, tag = 'smem constant byte address 0x4 - core index']
  #allocation1 [shape = 'u32[144,128]{1,0:T(1,128)}', space=vmem, size = 0x12000, scoped, tag = 'internal scratch']
  %s0 = inlined_call_operand.vmem [shape: f32[8,64], index: 0, kind: input, shape index: {}]
  %s1 = inlined_call_operand.vmem [shape: f32[64,8], index: 1, kind: input, shape index: {}]
  %s2 = inlined_call_operand.hbm [shape: f32[2,64,1024], index: 2, kind: input, shape index: {}]
  %s3 = inlined_call_operand.hbm [shape: f32[2,64,1024], index: 3, kind: output, shape index: {}]
  %s4 = sld [smem:[#allocation0]]
  $region49: #{tpu_custom_call.1} parent=0
    _
  %s6 = ssub.s32 1, %s4
  %s7 = scalar_select 0, %s6, %s4
  $region1: #{tpu_custom_call.1} parent=0
    #allocation2 [shape = 'u8[524288]{0}', space=vmem, size = 0x80000, scoped, tag = 'input window, operand 2']
    #allocation3 [shape = 's32[2]{0}', space=sflag, size = 0x8, scoped, tag = 'scoped memory for tpu_custom_call.1']
    #allocation4 [shape = 's32[2]{0}', space=sflag, size = 0x8, scoped, tag = 'scoped memory for tpu_custom_call.1']
    #allocation5 [shape = 'u8[524288]{0}', space=vmem, size = 0x80000, scoped, tag = 'output window, operand 0']
    %8 = vsyncpa [#allocation3], 0
    %s9 = scalar_lea.sflag [#allocation3], 1
    %10 = vsyncpa %s9, 0
    %11 = vsyncpa [#allocation4], 0
    %s12 = scalar_lea.sflag [#allocation4], 1
    %13 = vsyncpa %s12, 0
    loop: start=0, step=1, limit=4
    $region2: #{tpu_custom_call.1} parent=1 // loop_pre_header
      _
    $region3: #{tpu_custom_call.1} parent=1 // loop_header
      %s15 = sphi 0, %s19
      %p16 = scmp.ge.s32.totalorder %s15, 4
      %s23 = sphi 0, %s23
      %s25 = sphi 0, %s23
      %s26 = sphi 0, %s25
      %s40 = sphi 0, %s26
      %s44 = sphi 0, %s44
      %s46 = sphi 0, %s44
      %s47 = sphi 0, %s46
      %s61 = sphi 0, %s47
      %s67 = sphi 0, %s69
      %s70 = sphi 0, %s67
      %s71 = sphi 0, %s70
      %s87 = sphi 0, %s71
      %s93 = sphi 0, %s95
      %s96 = sphi 0, %s93
      %s97 = sphi 0, %s96
      %s113 = sphi 0, %s97
    $region4: #{tpu_custom_call.1} parent=1 // loop_header_branch
      %18 = sbr.rel (%p16) target = $region8
    $region5: #{tpu_custom_call.1} parent=1 // loop_body
      %s20 = ssub.s32 %s15, 1
      %s21 = ssub.s32 %s15, 2
      %s22 = sadd.s32 %s15, 1
      %s24 = sadd.s32 %s23, 1
      %p27 = scmp.eq.s32.totalorder %s15, 1
      %p28 = scmp.ne.s32.totalorder %s23, %s25
      %p29 = scmp.eq.s32.totalorder %s15, 0
      %p30 = por %p28, %p29
      %p31 = scmp.ne.s32.totalorder %s23, %s25
      %p32 = scmp.eq.s32.totalorder %s20, 1
      %p33 = por %p31, %p32
      %p34 = scmp.ne.s32.totalorder %s25, %s26
      %p35 = scmp.eq.s32.totalorder %s20, 0
      %p36 = por %p34, %p35
      %p37 = scmp.ne.s32.totalorder %s25, %s26
      %p38 = scmp.eq.s32.totalorder %s21, 1
      %p39 = por %p37, %p38
      %p41 = scmp.ne.s32.totalorder %s26, %s40
      %p42 = scmp.eq.s32.totalorder %s21, 0
      %p43 = por %p41, %p42
      %s45 = sadd.s32 %s44, 1
      %p48 = scmp.eq.s32.totalorder %s15, 1
      %p49 = scmp.ne.s32.totalorder %s44, %s46
      %p50 = scmp.eq.s32.totalorder %s15, 0
      %p51 = por %p49, %p50
      %p52 = scmp.ne.s32.totalorder %s44, %s46
      %p53 = scmp.eq.s32.totalorder %s20, 1
      %p54 = por %p52, %p53
      %p55 = scmp.ne.s32.totalorder %s46, %s47
      %p56 = scmp.eq.s32.totalorder %s20, 0
      %p57 = por %p55, %p56
      %p58 = scmp.ne.s32.totalorder %s46, %s47
      %p59 = scmp.eq.s32.totalorder %s21, 1
      %p60 = por %p58, %p59
      %p62 = scmp.ne.s32.totalorder %s47, %s61
      %p63 = scmp.eq.s32.totalorder %s21, 0
      %p64 = por %p62, %p63
      %s65 = ssub.s32 %s15, %s22
      %p66 = scmp.eq.s32.totalorder %s65, 0
      %s68 = sadd.s32 %s67, 1
      %s69 = scalar_select %p66, %s67, %s68
      %p72 = pneg %p66
      %p73 = scmp.eq.s32.totalorder %s15, 1
      %p74 = por %p72, %p73
      %p75 = scmp.ne.s32.totalorder %s67, %s70
      %p76 = scmp.eq.s32.totalorder %s15, 0
      %p77 = por %p75, %p76
      %p78 = scmp.ne.s32.totalorder %s67, %s70
      %p79 = scmp.eq.s32.totalorder %s20, 1
      %p80 = por %p78, %p79
      %p81 = scmp.ne.s32.totalorder %s70, %s71
      %p82 = scmp.eq.s32.totalorder %s20, 0
      %p83 = por %p81, %p82
      %p84 = scmp.ne.s32.totalorder %s70, %s71
      %p85 = scmp.eq.s32.totalorder %s21, 1
      %p86 = por %p84, %p85
      %p88 = scmp.ne.s32.totalorder %s71, %s87
      %p89 = scmp.eq.s32.totalorder %s21, 0
      %p90 = por %p88, %p89
      %s91 = ssub.s32 %s15, %s22
      %p92 = scmp.eq.s32.totalorder %s91, 0
      %s94 = sadd.s32 %s93, 1
      %s95 = scalar_select %p92, %s93, %s94
      %p98 = pneg %p92
      %p99 = scmp.eq.s32.totalorder %s15, 1
      %p100 = por %p98, %p99
      %p101 = scmp.ne.s32.totalorder %s93, %s96
      %p102 = scmp.eq.s32.totalorder %s15, 0
      %p103 = por %p101, %p102
      %p104 = scmp.ne.s32.totalorder %s93, %s96
      %p105 = scmp.eq.s32.totalorder %s20, 1
      %p106 = por %p104, %p105
      %p107 = scmp.ne.s32.totalorder %s96, %s97
      %p108 = scmp.eq.s32.totalorder %s20, 0
      %p109 = por %p107, %p108
      %p110 = scmp.ne.s32.totalorder %s96, %s97
      %p111 = scmp.eq.s32.totalorder %s21, 1
      %p112 = por %p110, %p111
      %p114 = scmp.ne.s32.totalorder %s97, %s113
      %p115 = scmp.eq.s32.totalorder %s21, 0
      %p116 = por %p114, %p115
      %p117 = scmp.le.s32.totalorder 1, %s15
      %p118 = scmp.lt.s32.totalorder %s15, 3
      %p119 = pnand %p117, %p118
      %p120 = pneg %p119
      // Predicated region
      $region9: #{tpu_custom_call.1} parent=5 // pred_check
        _
      $region10: #{tpu_custom_call.1} parent=5 // pred_check_branch
        %122 = sbr.rel (%p119) target = $region12
      $region11: #{tpu_custom_call.1} parent=5 // pred_region
        %s123 = ssub.s32 %s15, 1
        // Predicated region
        $region13: #{tpu_custom_call.1} parent=11 // pred_check
          %p124 = pneg %p36
        $region14: #{tpu_custom_call.1} parent=11 // pred_check_branch
          %126 = sbr.rel (%p124) target = $region16
        $region15: #{tpu_custom_call.1} parent=11 // pred_region
          _
        $region16: #{tpu_custom_call.1} parent=11 // pred_fallthru
          _
        // Predicated region
        $region17: #{tpu_custom_call.1} parent=11 // pred_check
          %p127 = pneg %p57
        $region18: #{tpu_custom_call.1} parent=11 // pred_check_branch
          %129 = sbr.rel (%p127) target = $region20
        $region19: #{tpu_custom_call.1} parent=11 // pred_region
          _
        $region20: #{tpu_custom_call.1} parent=11 // pred_fallthru
          _
      $region12: #{tpu_custom_call.1} parent=5 // pred_fallthru
        _
      %p130 = scmp.lt.s32.totalorder %s15, 2
      // Predicated region
      $region21: #{tpu_custom_call.1} parent=5 // pred_check
        %p131 = pneg %p130
      $region22: #{tpu_custom_call.1} parent=5 // pred_check_branch
        %133 = sbr.rel (%p131) target = $region24
      $region23: #{tpu_custom_call.1} parent=5 // pred_region
        // Predicated region
        $region25: #{tpu_custom_call.1} parent=23 // pred_check
          %p134 = pneg %p77
        $region26: #{tpu_custom_call.1} parent=23 // pred_check_branch
          %136 = sbr.rel (%p134) target = $region28
        $region27: #{tpu_custom_call.1} parent=23 // pred_region
          %s137 = sand.u32 %s67, 1
          %s138 = scalar_lea.sflag [#allocation3], %s137
          %s139 = sand.u32 %s67, 1
          %s140 = smul.addr %s139, 512
          %s141 = scalar_lea.vmem [#allocation2], %s140
          %s143 = ssub.s32 8192, 8192
          %144 = vsyncadd %s138, %s143
          %s145 = smul.addr %s15, 64
          %s146 = smul.addr %s145, 128
          %s147 = scalar_lea.hbm %s2, %s146
          %s148 = sshll.u32 %s141, 4
          %s149 = int_to_ptr.vmem [resolvable:$true] %s148
          %154 = dma.hbm_to_vmem [thread:$0]  %s147, 8192, %s149, %s138, 1024, 1024, 64
        $region28: #{tpu_custom_call.1} parent=23 // pred_fallthru
          _
      $region24: #{tpu_custom_call.1} parent=5 // pred_fallthru
        _
      %p155 = scmp.le.s32.totalorder 1, %s15
      %p156 = scmp.lt.s32.totalorder %s15, 3
      %p157 = pnand %p155, %p156
      %p158 = pneg %p157
      // Predicated region
      $region29: #{tpu_custom_call.1} parent=5 // pred_check
        _
      $region30: #{tpu_custom_call.1} parent=5 // pred_check_branch
        %160 = sbr.rel (%p157) target = $region32
      $region31: #{tpu_custom_call.1} parent=5 // pred_region
        %s161 = ssub.s32 %s15, 1
        %s162 = sand.u32 %s70, 1
        %s163 = scalar_lea.sflag [#allocation3], %s162
        %s164 = sand.u32 %s70, 1
        %s165 = smul.addr %s164, 512
        %s166 = scalar_lea.vmem [#allocation2], %s165
        // Predicated region
        $region33: #{tpu_custom_call.1} parent=31 // pred_check
          %p167 = pneg %p83
        $region34: #{tpu_custom_call.1} parent=31 // pred_check_branch
          %169 = sbr.rel (%p167) target = $region36
        $region35: #{tpu_custom_call.1} parent=31 // pred_region
          %170 = dma.done %s163, 8192
        $region36: #{tpu_custom_call.1} parent=31 // pred_fallthru
          _
        %p171 = pneg %p36
        %p172 = pneg %p33
        %p173 = pneg %p57
        %p174 = pneg %p54
        %s175 = sand.u32 %s70, 1
        %s176 = scalar_lea.sflag [#allocation3], %s175
        %s177 = sand.u32 %s70, 1
        %s178 = smul.addr %s177, 512
        %s179 = scalar_lea.vmem [#allocation2], %s178
        %p180 = pneg %p83
        %p181 = pneg %p80
        %p182 = pneg %p109
        %p183 = pneg %p106
        %s184 = sand.u32 %s96, 1
        %s185 = scalar_lea.sflag [#allocation4], %s184
        %s186 = sand.u32 %s96, 1
        %s187 = smul.addr %s186, 512
        %s188 = scalar_lea.vmem [#allocation5], %s187
        %v189 = vld [vmem:[%s166] sm:$0xff]
        %v190 = vld [vmem:[%s166 + $0x8] sm:$0xff]
        %v191 = vld [vmem:[%s166 + $0x10] sm:$0xff]
        %v192 = vld [vmem:[%s166 + $0x18] sm:$0xff]
        %v193 = vld [vmem:[%s166 + $0x20] sm:$0xff]
        %v194 = vld [vmem:[%s166 + $0x28] sm:$0xff]
        %v195 = vld [vmem:[%s166 + $0x30] sm:$0xff]
        %v196 = vld [vmem:[%s166 + $0x38] sm:$0xff]
        %v197 = vld [vmem:[%s166 + $0x40] sm:$0xff]
        %v198 = vld [vmem:[%s166 + $0x48] sm:$0xff]
        %v199 = vld [vmem:[%s166 + $0x50] sm:$0xff]
        %v200 = vld [vmem:[%s166 + $0x58] sm:$0xff]
        %v201 = vld [vmem:[%s166 + $0x60] sm:$0xff]
        %v202 = vld [vmem:[%s166 + $0x68] sm:$0xff]
        %v203 = vld [vmem:[%s166 + $0x70] sm:$0xff]
        %v204 = vld [vmem:[%s166 + $0x78] sm:$0xff]
        %v205 = vld [vmem:[%s166 + $0x80] sm:$0xff]
        %v206 = vld [vmem:[%s166 + $0x88] sm:$0xff]
        %v207 = vld [vmem:[%s166 + $0x90] sm:$0xff]
        %v208 = vld [vmem:[%s166 + $0x98] sm:$0xff]
        %v209 = vld [vmem:[%s166 + $0xa0] sm:$0xff]
        %v210 = vld [vmem:[%s166 + $0xa8] sm:$0xff]
        %v211 = vld [vmem:[%s166 + $0xb0] sm:$0xff]
        %v212 = vld [vmem:[%s166 + $0xb8] sm:$0xff]
        %v213 = vld [vmem:[%s166 + $0xc0] sm:$0xff]
        %v214 = vld [vmem:[%s166 + $0xc8] sm:$0xff]
        %v215 = vld [vmem:[%s166 + $0xd0] sm:$0xff]
        %v216 = vld [vmem:[%s166 + $0xd8] sm:$0xff]
        %v217 = vld [vmem:[%s166 + $0xe0] sm:$0xff]
        %v218 = vld [vmem:[%s166 + $0xe8] sm:$0xff]
        %v219 = vld [vmem:[%s166 + $0xf0] sm:$0xff]
        %v220 = vld [vmem:[%s166 + $0xf8] sm:$0xff]
        %v221 = vld [vmem:[%s166 + $0x100] sm:$0xff]
        %v222 = vld [vmem:[%s166 + $0x108] sm:$0xff]
        %v223 = vld [vmem:[%s166 + $0x110] sm:$0xff]
        %v224 = vld [vmem:[%s166 + $0x118] sm:$0xff]
        %v225 = vld [vmem:[%s166 + $0x120] sm:$0xff]
        %v226 = vld [vmem:[%s166 + $0x128] sm:$0xff]
        %v227 = vld [vmem:[%s166 + $0x130] sm:$0xff]
        %v228 = vld [vmem:[%s166 + $0x138] sm:$0xff]
        %v229 = vld [vmem:[%s166 + $0x140] sm:$0xff]
        %v230 = vld [vmem:[%s166 + $0x148] sm:$0xff]
        %v231 = vld [vmem:[%s166 + $0x150] sm:$0xff]
        %v232 = vld [vmem:[%s166 + $0x158] sm:$0xff]
        %v233 = vld [vmem:[%s166 + $0x160] sm:$0xff]
        %v234 = vld [vmem:[%s166 + $0x168] sm:$0xff]
        %v235 = vld [vmem:[%s166 + $0x170] sm:$0xff]
        %v236 = vld [vmem:[%s166 + $0x178] sm:$0xff]
        %v237 = vld [vmem:[%s166 + $0x180] sm:$0xff]
        %v238 = vld [vmem:[%s166 + $0x188] sm:$0xff]
        %v239 = vld [vmem:[%s166 + $0x190] sm:$0xff]
        %v240 = vld [vmem:[%s166 + $0x198] sm:$0xff]
        %v241 = vld [vmem:[%s166 + $0x1a0] sm:$0xff]
        %v242 = vld [vmem:[%s166 + $0x1a8] sm:$0xff]
        %v243 = vld [vmem:[%s166 + $0x1b0] sm:$0xff]
        %v244 = vld [vmem:[%s166 + $0x1b8] sm:$0xff]
        %v245 = vld [vmem:[%s166 + $0x1c0] sm:$0xff]
        %v246 = vld [vmem:[%s166 + $0x1c8] sm:$0xff]
        %v247 = vld [vmem:[%s166 + $0x1d0] sm:$0xff]
        %v248 = vld [vmem:[%s166 + $0x1d8] sm:$0xff]
        %v249 = vld [vmem:[%s166 + $0x1e0] sm:$0xff]
        %v250 = vld [vmem:[%s166 + $0x1e8] sm:$0xff]
        %v251 = vld [vmem:[%s166 + $0x1f0] sm:$0xff]
        %v252 = vld [vmem:[%s166 + $0x1f8] sm:$0xff]
        %v253 = vadd.f32 %v189, %v190
        %v254 = vadd.f32 %v253, %v191
        %v255 = vadd.f32 %v254, %v192
        %v256 = vadd.f32 %v255, %v193
        %v257 = vadd.f32 %v256, %v194
        %v258 = vadd.f32 %v257, %v195
        %v259 = vadd.f32 %v258, %v196
        %260 = vadd.xlane.f32.xlu0 %v259
        %v261 = vpop.xlane.xlu0 %260
        %v262 = vadd.f32 %v197, %v198
        %v263 = vadd.f32 %v262, %v199
        %v264 = vadd.f32 %v263, %v200
        %v265 = vadd.f32 %v264, %v201
        %v266 = vadd.f32 %v265, %v202
        %v267 = vadd.f32 %v266, %v203
        %v268 = vadd.f32 %v267, %v204
        %269 = vadd.xlane.f32.xlu0 %v268
        %v270 = vpop.xlane.xlu0 %269
        %v271 = vadd.f32 %v205, %v206
        %v272 = vadd.f32 %v271, %v207
        %v273 = vadd.f32 %v272, %v208
        %v274 = vadd.f32 %v273, %v209
        %v275 = vadd.f32 %v274, %v210
        %v276 = vadd.f32 %v275, %v211
        %v277 = vadd.f32 %v276, %v212
        %278 = vadd.xlane.f32.xlu0 %v277
        %v279 = vpop.xlane.xlu0 %278
        %v280 = vadd.f32 %v213, %v214
        %v281 = vadd.f32 %v280, %v215
        %v282 = vadd.f32 %v281, %v216
        %v283 = vadd.f32 %v282, %v217
        %v284 = vadd.f32 %v283, %v218
        %v285 = vadd.f32 %v284, %v219
        %v286 = vadd.f32 %v285, %v220
        %287 = vadd.xlane.f32.xlu0 %v286
        %v288 = vpop.xlane.xlu0 %287
        %v289 = vadd.f32 %v221, %v222
        %v290 = vadd.f32 %v289, %v223
        %v291 = vadd.f32 %v290, %v224
        %v292 = vadd.f32 %v291, %v225
        %v293 = vadd.f32 %v292, %v226
        %v294 = vadd.f32 %v293, %v227
        %v295 = vadd.f32 %v294, %v228
        %296 = vadd.xlane.f32.xlu0 %v295
        %v297 = vpop.xlane.xlu0 %296
        %v298 = vadd.f32 %v229, %v230
        %v299 = vadd.f32 %v298, %v231
        %v300 = vadd.f32 %v299, %v232
        %v301 = vadd.f32 %v300, %v233
        %v302 = vadd.f32 %v301, %v234
        %v303 = vadd.f32 %v302, %v235
        %v304 = vadd.f32 %v303, %v236
        %305 = vadd.xlane.f32.xlu0 %v304
        %v306 = vpop.xlane.xlu0 %305
        %v307 = vadd.f32 %v237, %v238
        %v308 = vadd.f32 %v307, %v239
        %v309 = vadd.f32 %v308, %v240
        %v310 = vadd.f32 %v309, %v241
        %v311 = vadd.f32 %v310, %v242
        %v312 = vadd.f32 %v311, %v243
        %v313 = vadd.f32 %v312, %v244
        %314 = vadd.xlane.f32.xlu0 %v313
        %v315 = vpop.xlane.xlu0 %314
        %v316 = vadd.f32 %v245, %v246
        %v317 = vadd.f32 %v316, %v247
        %v318 = vadd.f32 %v317, %v248
        %v319 = vadd.f32 %v318, %v249
        %v320 = vadd.f32 %v319, %v250
        %v321 = vadd.f32 %v320, %v251
        %v322 = vadd.f32 %v321, %v252
        %323 = vadd.xlane.f32.xlu0 %v322
        %v324 = vpop.xlane.xlu0 %323
        %v325 = vmul.f32 %v261, 0.0009765625
        %v326 = vmul.f32 %v270, 0.0009765625
        %v327 = vmul.f32 %v279, 0.0009765625
        %v328 = vmul.f32 %v288, 0.0009765625
        %v329 = vmul.f32 %v297, 0.0009765625
        %v330 = vmul.f32 %v306, 0.0009765625
        %v331 = vmul.f32 %v315, 0.0009765625
        %v332 = vmul.f32 %v324, 0.0009765625
        %v333 = vld [vmem:[%s0] sm:$0xff]
        %vm334 = vcmask 523264
        %v336 = vsel %vm334, %v333, 0
        %338 = vmatprep.subr.mxu0 0.0
        %339 = vmatpush1.msra.mxu0 %v325
        %340 = vmatprep.subr.mxu0 0.0
        %341 = vmatpush1.msra.mxu0 %v326
        %342 = vmatprep.subr.mxu0 0.0
        %343 = vmatpush1.msra.mxu0 %v327
        %344 = vmatprep.subr.mxu0 0.0
        %345 = vmatpush1.msra.mxu0 %v328
        %346 = vmatprep.subr.mxu0 0.0
        %347 = vmatpush1.msra.mxu0 %v329
        %348 = vmatprep.subr.mxu0 0.0
        %349 = vmatpush1.msra.mxu0 %v330
        %350 = vmatprep.subr.mxu0 0.0
        %351 = vmatpush1.msra.mxu0 %v331
        %352 = vmatprep.subr.mxu0 0.0
        %353 = vmatpush1.msra.mxu0 %v332
        %354 = vmatprep.subr.mxu0 0.0
        %355 = vmatpush1.msra.mxu0 0.0
        %356 = vmatprep.subr.mxu0 0.0
        %357 = vmatpush1.msra.mxu0 0.0
        %358 = vmatprep.subr.mxu0 0.0
        %359 = vmatpush1.msra.mxu0 0.0
        %360 = vmatprep.subr.mxu0 0.0
        %361 = vmatpush1.msra.mxu0 0.0
        %362 = vmatprep.subr.mxu0 0.0
        %363 = vmatpush1.msra.mxu0 0.0
        %364 = vmatprep.subr.mxu0 0.0
        %365 = vmatpush1.msra.mxu0 0.0
        %366 = vmatprep.subr.mxu0 0.0
        %367 = vmatpush1.msra.mxu0 0.0
        %368 = vmatprep.subr.mxu0 0.0
        %369 = vmatpush1.msra.mxu0 0.0
        %370 = vmatprep.subr.mxu0 0.0
        %371 = vmatpush1.msra.mxu0 0.0
        %372 = vmatprep.subr.mxu0 0.0
        %373 = vmatpush1.msra.mxu0 0.0
        %374 = vmatprep.subr.mxu0 0.0
        %375 = vmatpush1.msra.mxu0 0.0
        %376 = vmatprep.subr.mxu0 0.0
        %377 = vmatpush1.msra.mxu0 0.0
        %378 = vmatprep.subr.mxu0 0.0
        %379 = vmatpush1.msra.mxu0 0.0
        %380 = vmatprep.subr.mxu0 0.0
        %381 = vmatpush1.msra.mxu0 0.0
        %382 = vmatprep.subr.mxu0 0.0
        %383 = vmatpush1.msra.mxu0 0.0
        %384 = vmatprep.subr.mxu0 0.0
        %385 = vmatpush1.msra.mxu0 0.0
        %386 = vmatprep.subr.mxu0 0.0
        %387 = vmatpush1.msra.mxu0 0.0
        %388 = vmatprep.subr.mxu0 0.0
        %389 = vmatpush1.msra.mxu0 0.0
        %390 = vmatprep.subr.mxu0 0.0
        %391 = vmatpush1.msra.mxu0 0.0
        %392 = vmatprep.subr.mxu0 0.0
        %393 = vmatpush1.msra.mxu0 0.0
        %394 = vmatprep.subr.mxu0 0.0
        %395 = vmatpush1.msra.mxu0 0.0
        %396 = vmatprep.subr.mxu0 0.0
        %397 = vmatpush1.msra.mxu0 0.0
        %398 = vmatprep.subr.mxu0 0.0
        %399 = vmatpush1.msra.mxu0 0.0
        %400 = vmatprep.subr.mxu0 0.0
        %401 = vmatpush1.msra.mxu0 0.0
        %402 = vmatprep.mubr.f32.mxu0 0.0
        %403 = vmatmul.mubr.f32.gmra.mrb[0].mxu0 %v336
        %v404 = vpop.f32.mrb[0].mxu0
        %v405 = vadd.f32 0.0, %v404
        %v406 = vpop.f32.mrb[0].mxu0
        %407 = vdwg.mxu0
        %v408 = vmax.f32 %v405, 0.0
        %v409 = vld [vmem:[%s1] sm:$0xff]
        %v410 = vld [vmem:[%s1 + $0x8] sm:$0xff]
        %v411 = vld [vmem:[%s1 + $0x10] sm:$0xff]
        %v412 = vld [vmem:[%s1 + $0x18] sm:$0xff]
        %v413 = vld [vmem:[%s1 + $0x20] sm:$0xff]
        %v414 = vld [vmem:[%s1 + $0x28] sm:$0xff]
        %v415 = vld [vmem:[%s1 + $0x30] sm:$0xff]
        %v416 = vld [vmem:[%s1 + $0x38] sm:$0xff]
        %vm417 = vcmask 64512
        %v419 = vsel %vm417, %v409, 0
        %v422 = vsel %vm417, %v410, 0
        %v425 = vsel %vm417, %v411, 0
        %v428 = vsel %vm417, %v412, 0
        %v431 = vsel %vm417, %v413, 0
        %v434 = vsel %vm417, %v414, 0
        %v437 = vsel %vm417, %v415, 0
        %v440 = vsel %vm417, %v416, 0
        %442 = vmatprep.subr.mxu0 0.0
        %443 = vmatpush1.msra.mxu0 %v408
        %444 = vmatprep.subr.mxu0 0.0
        %445 = vmatpush1.msra.mxu0 0.0
        %446 = vmatprep.subr.mxu0 0.0
        %447 = vmatpush1.msra.mxu0 0.0
        %448 = vmatprep.subr.mxu0 0.0
        %449 = vmatpush1.msra.mxu0 0.0
        %450 = vmatprep.subr.mxu0 0.0
        %451 = vmatpush1.msra.mxu0 0.0
        %452 = vmatprep.subr.mxu0 0.0
        %453 = vmatpush1.msra.mxu0 0.0
        %454 = vmatprep.subr.mxu0 0.0
        %455 = vmatpush1.msra.mxu0 0.0
        %456 = vmatprep.subr.mxu0 0.0
        %457 = vmatpush1.msra.mxu0 0.0
        %458 = vmatprep.subr.mxu0 0.0
        %459 = vmatpush1.msra.mxu0 0.0
        %460 = vmatprep.subr.mxu0 0.0
        %461 = vmatpush1.msra.mxu0 0.0
        %462 = vmatprep.subr.mxu0 0.0
        %463 = vmatpush1.msra.mxu0 0.0
        %464 = vmatprep.subr.mxu0 0.0
        %465 = vmatpush1.msra.mxu0 0.0
        %466 = vmatprep.subr.mxu0 0.0
        %467 = vmatpush1.msra.mxu0 0.0
        %468 = vmatprep.subr.mxu0 0.0
        %469 = vmatpush1.msra.mxu0 0.0
        %470 = vmatprep.subr.mxu0 0.0
        %471 = vmatpush1.msra.mxu0 0.0
        %472 = vmatprep.subr.mxu0 0.0
        %473 = vmatpush1.msra.mxu0 0.0
        %474 = vmatprep.subr.mxu0 0.0
        %475 = vmatpush1.msra.mxu0 0.0
        %476 = vmatprep.subr.mxu0 0.0
        %477 = vmatpush1.msra.mxu0 0.0
        %478 = vmatprep.subr.mxu0 0.0
        %479 = vmatpush1.msra.mxu0 0.0
        %480 = vmatprep.subr.mxu0 0.0
        %481 = vmatpush1.msra.mxu0 0.0
        %482 = vmatprep.subr.mxu0 0.0
        %483 = vmatpush1.msra.mxu0 0.0
        %484 = vmatprep.subr.mxu0 0.0
        %485 = vmatpush1.msra.mxu0 0.0
        %486 = vmatprep.subr.mxu0 0.0
        %487 = vmatpush1.msra.mxu0 0.0
        %488 = vmatprep.subr.mxu0 0.0
        %489 = vmatpush1.msra.mxu0 0.0
        %490 = vmatprep.subr.mxu0 0.0
        %491 = vmatpush1.msra.mxu0 0.0
        %492 = vmatprep.subr.mxu0 0.0
        %493 = vmatpush1.msra.mxu0 0.0
        %494 = vmatprep.subr.mxu0 0.0
        %495 = vmatpush1.msra.mxu0 0.0
        %496 = vmatprep.subr.mxu0 0.0
        %497 = vmatpush1.msra.mxu0 0.0
        %498 = vmatprep.subr.mxu0 0.0
        %499 = vmatpush1.msra.mxu0 0.0
        %500 = vmatprep.subr.mxu0 0.0
        %501 = vmatpush1.msra.mxu0 0.0
        %502 = vmatprep.subr.mxu0 0.0
        %503 = vmatpush1.msra.mxu0 0.0
        %504 = vmatprep.subr.mxu0 0.0
        %505 = vmatpush1.msra.mxu0 0.0
        %506 = vmatprep.mubr.f32.mxu0 0.0
        %507 = vmatmul.mubr.f32.gmra.mrb[0].mxu0 %v419
        %v508 = vpop.f32.mrb[0].mxu0
        %v509 = vadd.f32 0.0, %v508
        %v510 = vpop.f32.mrb[0].mxu0
        %511 = vmatprep.mubr.f32.mxu0 0.0
        %512 = vmatmul.mubr.f32.gmra.mrb[0].mxu0 %v422
        %v513 = vpop.f32.mrb[0].mxu0
        %v514 = vadd.f32 0.0, %v513
        %v515 = vpop.f32.mrb[0].mxu0
        %516 = vmatprep.mubr.f32.mxu0 0.0
        %517 = vmatmul.mubr.f32.gmra.mrb[0].mxu0 %v425
        %v518 = vpop.f32.mrb[0].mxu0
        %v519 = vadd.f32 0.0, %v518
        %v520 = vpop.f32.mrb[0].mxu0
        %521 = vmatprep.mubr.f32.mxu0 0.0
        %522 = vmatmul.mubr.f32.gmra.mrb[0].mxu0 %v428
        %v523 = vpop.f32.mrb[0].mxu0
        %v524 = vadd.f32 0.0, %v523
        %v525 = vpop.f32.mrb[0].mxu0
        %526 = vmatprep.mubr.f32.mxu0 0.0
        %527 = vmatmul.mubr.f32.gmra.mrb[0].mxu0 %v431
        %v528 = vpop.f32.mrb[0].mxu0
        %v529 = vadd.f32 0.0, %v528
        %v530 = vpop.f32.mrb[0].mxu0
        %531 = vmatprep.mubr.f32.mxu0 0.0
        %532 = vmatmul.mubr.f32.gmra.mrb[0].mxu0 %v434
        %v533 = vpop.f32.mrb[0].mxu0
        %v534 = vadd.f32 0.0, %v533
        %v535 = vpop.f32.mrb[0].mxu0
        %536 = vmatprep.mubr.f32.mxu0 0.0
        %537 = vmatmul.mubr.f32.gmra.mrb[0].mxu0 %v437
        %v538 = vpop.f32.mrb[0].mxu0
        %v539 = vadd.f32 0.0, %v538
        %v540 = vpop.f32.mrb[0].mxu0
        %541 = vmatprep.mubr.f32.mxu0 0.0
        %542 = vmatmul.mubr.f32.gmra.mrb[0].mxu0 %v440
        %v543 = vpop.f32.mrb[0].mxu0
        %v544 = vadd.f32 0.0, %v543
        %v545 = vpop.f32.mrb[0].mxu0
        %546 = vdwg.mxu0
        %v547 = vsub.f32 0.0, %v509
        %v548 = vsub.f32 0.0, %v514
        %v549 = vsub.f32 0.0, %v519
        %v550 = vsub.f32 0.0, %v524
        %v551 = vsub.f32 0.0, %v529
        %v552 = vsub.f32 0.0, %v534
        %v553 = vsub.f32 0.0, %v539
        %v554 = vsub.f32 0.0, %v544
        %v555 = vmul.f32 %v547, 1.442695
        %v556 = vpow.pop %v555
        %v557 = vmul.f32 %v548, 1.442695
        %v558 = vpow.pop %v557
        %v559 = vmul.f32 %v549, 1.442695
        %v560 = vpow.pop %v559
        %v561 = vmul.f32 %v550, 1.442695
        %v562 = vpow.pop %v561
        %v563 = vmul.f32 %v551, 1.442695
        %v564 = vpow.pop %v563
        %v565 = vmul.f32 %v552, 1.442695
        %v566 = vpow.pop %v565
        %v567 = vmul.f32 %v553, 1.442695
        %v568 = vpow.pop %v567
        %v569 = vmul.f32 %v554, 1.442695
        %v570 = vpow.pop %v569
        %v571 = vadd.f32 %v556, 1.0
        %v572 = vadd.f32 %v558, 1.0
        %v573 = vadd.f32 %v560, 1.0
        %v574 = vadd.f32 %v562, 1.0
        %v575 = vadd.f32 %v564, 1.0
        %v576 = vadd.f32 %v566, 1.0
        %v577 = vadd.f32 %v568, 1.0
        %v578 = vadd.f32 %v570, 1.0
        %v579 = vrcp.pop %v571
        %v580 = vmul.f32 1.0, %v579
        %v581 = vrcp.pop %v572
        %v582 = vmul.f32 1.0, %v581
        %v583 = vrcp.pop %v573
        %v584 = vmul.f32 1.0, %v583
        %v585 = vrcp.pop %v574
        %v586 = vmul.f32 1.0, %v585
        %v587 = vrcp.pop %v575
        %v588 = vmul.f32 1.0, %v587
        %v589 = vrcp.pop %v576
        %v590 = vmul.f32 1.0, %v589
        %v591 = vrcp.pop %v577
        %v592 = vmul.f32 1.0, %v591
        %v593 = vrcp.pop %v578
        %v594 = vmul.f32 1.0, %v593
        %596 = vset.pattern.permute.xlu0 0
        %597 = vperm.xlu0 %596, %v580
        %v598 = vpop.permute.xlu0 %597
        %601 = vset.pattern.permute.xlu0 0
        %602 = vperm.xlu0 %601, %v582
        %v603 = vpop.permute.xlu0 %602
        %606 = vset.pattern.permute.xlu0 0
        %607 = vperm.xlu0 %606, %v584
        %v608 = vpop.permute.xlu0 %607
        %611 = vset.pattern.permute.xlu0 0
        %612 = vperm.xlu0 %611, %v586
        %v613 = vpop.permute.xlu0 %612
        %616 = vset.pattern.permute.xlu0 0
        %617 = vperm.xlu0 %616, %v588
        %v618 = vpop.permute.xlu0 %617
        %621 = vset.pattern.permute.xlu0 0
        %622 = vperm.xlu0 %621, %v590
        %v623 = vpop.permute.xlu0 %622
        %626 = vset.pattern.permute.xlu0 0
        %627 = vperm.xlu0 %626, %v592
        %v628 = vpop.permute.xlu0 %627
        %631 = vset.pattern.permute.xlu0 0
        %632 = vperm.xlu0 %631, %v594
        %v633 = vpop.permute.xlu0 %632
        %v635 = vmul.f32 %v189, %v598
        %v636 = vmul.f32 %v190, %v598
        %v637 = vmul.f32 %v191, %v598
        %v638 = vmul.f32 %v192, %v598
        %v639 = vmul.f32 %v193, %v598
        %v640 = vmul.f32 %v194, %v598
        %v641 = vmul.f32 %v195, %v598
        %v642 = vmul.f32 %v196, %v598
        %v643 = vmul.f32 %v197, %v603
        %v644 = vmul.f32 %v198, %v603
        %v645 = vmul.f32 %v199, %v603
        %v646 = vmul.f32 %v200, %v603
        %v647 = vmul.f32 %v201, %v603
        %v648 = vmul.f32 %v202, %v603
        %v649 = vmul.f32 %v203, %v603
        %v650 = vmul.f32 %v204, %v603
        %v651 = vmul.f32 %v205, %v608
        %v652 = vmul.f32 %v206, %v608
        %v653 = vmul.f32 %v207, %v608
        %v654 = vmul.f32 %v208, %v608
        %v655 = vmul.f32 %v209, %v608
        %v656 = vmul.f32 %v210, %v608
        %v657 = vmul.f32 %v211, %v608
        %v658 = vmul.f32 %v212, %v608
        %v659 = vmul.f32 %v213, %v613
        %v660 = vmul.f32 %v214, %v613
        %v661 = vmul.f32 %v215, %v613
        %v662 = vmul.f32 %v216, %v613
        %v663 = vmul.f32 %v217, %v613
        %v664 = vmul.f32 %v218, %v613
        %v665 = vmul.f32 %v219, %v613
        %v666 = vmul.f32 %v220, %v613
        %v667 = vmul.f32 %v221, %v618
        %v668 = vmul.f32 %v222, %v618
        %v669 = vmul.f32 %v223, %v618
        %v670 = vmul.f32 %v224, %v618
        %v671 = vmul.f32 %v225, %v618
        %v672 = vmul.f32 %v226, %v618
        %v673 = vmul.f32 %v227, %v618
        %v674 = vmul.f32 %v228, %v618
        %v675 = vmul.f32 %v229, %v623
        %v676 = vmul.f32 %v230, %v623
        %v677 = vmul.f32 %v231, %v623
        %v678 = vmul.f32 %v232, %v623
        %v679 = vmul.f32 %v233, %v623
        %v680 = vmul.f32 %v234, %v623
        %v681 = vmul.f32 %v235, %v623
        %v682 = vmul.f32 %v236, %v623
        %v683 = vmul.f32 %v237, %v628
        %v684 = vmul.f32 %v238, %v628
        %v685 = vmul.f32 %v239, %v628
        %v686 = vmul.f32 %v240, %v628
        %v687 = vmul.f32 %v241, %v628
        %v688 = vmul.f32 %v242, %v628
        %v689 = vmul.f32 %v243, %v628
        %v690 = vmul.f32 %v244, %v628
        %v691 = vmul.f32 %v245, %v633
        %v692 = vmul.f32 %v246, %v633
        %v693 = vmul.f32 %v247, %v633
        %v694 = vmul.f32 %v248, %v633
        %v695 = vmul.f32 %v249, %v633
        %v696 = vmul.f32 %v250, %v633
        %v697 = vmul.f32 %v251, %v633
        %v698 = vmul.f32 %v252, %v633
        %699 = vst [vmem:[%s188] sm:$0xff] %v635
        %700 = vst [vmem:[%s188 + $0x8] sm:$0xff] %v636
        %701 = vst [vmem:[%s188 + $0x10] sm:$0xff] %v637
        %702 = vst [vmem:[%s188 + $0x18] sm:$0xff] %v638
        %703 = vst [vmem:[%s188 + $0x20] sm:$0xff] %v639
        %704 = vst [vmem:[%s188 + $0x28] sm:$0xff] %v640
        %705 = vst [vmem:[%s188 + $0x30] sm:$0xff] %v641
        %706 = vst [vmem:[%s188 + $0x38] sm:$0xff] %v642
        %707 = vst [vmem:[%s188 + $0x40] sm:$0xff] %v643
        %708 = vst [vmem:[%s188 + $0x48] sm:$0xff] %v644
        %709 = vst [vmem:[%s188 + $0x50] sm:$0xff] %v645
        %710 = vst [vmem:[%s188 + $0x58] sm:$0xff] %v646
        %711 = vst [vmem:[%s188 + $0x60] sm:$0xff] %v647
        %712 = vst [vmem:[%s188 + $0x68] sm:$0xff] %v648
        %713 = vst [vmem:[%s188 + $0x70] sm:$0xff] %v649
        %714 = vst [vmem:[%s188 + $0x78] sm:$0xff] %v650
        %715 = vst [vmem:[%s188 + $0x80] sm:$0xff] %v651
        %716 = vst [vmem:[%s188 + $0x88] sm:$0xff] %v652
        %717 = vst [vmem:[%s188 + $0x90] sm:$0xff] %v653
        %718 = vst [vmem:[%s188 + $0x98] sm:$0xff] %v654
        %719 = vst [vmem:[%s188 + $0xa0] sm:$0xff] %v655
        %720 = vst [vmem:[%s188 + $0xa8] sm:$0xff] %v656
        %721 = vst [vmem:[%s188 + $0xb0] sm:$0xff] %v657
        %722 = vst [vmem:[%s188 + $0xb8] sm:$0xff] %v658
        %723 = vst [vmem:[%s188 + $0xc0] sm:$0xff] %v659
        %724 = vst [vmem:[%s188 + $0xc8] sm:$0xff] %v660
        %725 = vst [vmem:[%s188 + $0xd0] sm:$0xff] %v661
        %726 = vst [vmem:[%s188 + $0xd8] sm:$0xff] %v662
        %727 = vst [vmem:[%s188 + $0xe0] sm:$0xff] %v663
        %728 = vst [vmem:[%s188 + $0xe8] sm:$0xff] %v664
        %729 = vst [vmem:[%s188 + $0xf0] sm:$0xff] %v665
        %730 = vst [vmem:[%s188 + $0xf8] sm:$0xff] %v666
        %731 = vst [vmem:[%s188 + $0x100] sm:$0xff] %v667
        %732 = vst [vmem:[%s188 + $0x108] sm:$0xff] %v668
        %733 = vst [vmem:[%s188 + $0x110] sm:$0xff] %v669
        %734 = vst [vmem:[%s188 + $0x118] sm:$0xff] %v670
        %735 = vst [vmem:[%s188 + $0x120] sm:$0xff] %v671
        %736 = vst [vmem:[%s188 + $0x128] sm:$0xff] %v672
        %737 = vst [vmem:[%s188 + $0x130] sm:$0xff] %v673
        %738 = vst [vmem:[%s188 + $0x138] sm:$0xff] %v674
        %739 = vst [vmem:[%s188 + $0x140] sm:$0xff] %v675
        %740 = vst [vmem:[%s188 + $0x148] sm:$0xff] %v676
        %741 = vst [vmem:[%s188 + $0x150] sm:$0xff] %v677
        %742 = vst [vmem:[%s188 + $0x158] sm:$0xff] %v678
        %743 = vst [vmem:[%s188 + $0x160] sm:$0xff] %v679
        %744 = vst [vmem:[%s188 + $0x168] sm:$0xff] %v680
        %745 = vst [vmem:[%s188 + $0x170] sm:$0xff] %v681
        %746 = vst [vmem:[%s188 + $0x178] sm:$0xff] %v682
        %747 = vst [vmem:[%s188 + $0x180] sm:$0xff] %v683
        %748 = vst [vmem:[%s188 + $0x188] sm:$0xff] %v684
        %749 = vst [vmem:[%s188 + $0x190] sm:$0xff] %v685
        %750 = vst [vmem:[%s188 + $0x198] sm:$0xff] %v686
        %751 = vst [vmem:[%s188 + $0x1a0] sm:$0xff] %v687
        %752 = vst [vmem:[%s188 + $0x1a8] sm:$0xff] %v688
        %753 = vst [vmem:[%s188 + $0x1b0] sm:$0xff] %v689
        %754 = vst [vmem:[%s188 + $0x1b8] sm:$0xff] %v690
        %755 = vst [vmem:[%s188 + $0x1c0] sm:$0xff] %v691
        %756 = vst [vmem:[%s188 + $0x1c8] sm:$0xff] %v692
        %757 = vst [vmem:[%s188 + $0x1d0] sm:$0xff] %v693
        %758 = vst [vmem:[%s188 + $0x1d8] sm:$0xff] %v694
        %759 = vst [vmem:[%s188 + $0x1e0] sm:$0xff] %v695
        %760 = vst [vmem:[%s188 + $0x1e8] sm:$0xff] %v696
        %761 = vst [vmem:[%s188 + $0x1f0] sm:$0xff] %v697
        %762 = vst [vmem:[%s188 + $0x1f8] sm:$0xff] %v698
        %s763 = sand.u32 %s96, 1
        %s764 = scalar_lea.sflag [#allocation4], %s763
        %s765 = sand.u32 %s96, 1
        %s766 = smul.addr %s765, 512
        %s767 = scalar_lea.vmem [#allocation5], %s766
        // Predicated region
        $region37: #{tpu_custom_call.1} parent=31 // pred_check
          %p768 = pneg %p106
        $region38: #{tpu_custom_call.1} parent=31 // pred_check_branch
          %770 = sbr.rel (%p768) target = $region40
        $region39: #{tpu_custom_call.1} parent=31 // pred_region
          %s772 = ssub.s32 8192, 8192
          %773 = vsyncadd %s764, %s772
          %s774 = smul.addr %s20, 64
          %s775 = smul.addr %s774, 128
          %s776 = scalar_lea.hbm %s3, %s775
          %s777 = sshll.u32 %s767, 4
          %s778 = int_to_ptr.vmem [resolvable:$true] %s777
          %783 = dma.vmem_to_hbm [thread:$0]  %s778, 8192, %s776, %s764, 1024, 1024, 64
        $region40: #{tpu_custom_call.1} parent=31 // pred_fallthru
          _
      $region32: #{tpu_custom_call.1} parent=5 // pred_fallthru
        _
      %p784 = scmp.le.s32.totalorder 2, %s15
      // Predicated region
      $region41: #{tpu_custom_call.1} parent=5 // pred_check
        %p785 = pneg %p784
      $region42: #{tpu_custom_call.1} parent=5 // pred_check_branch
        %787 = sbr.rel (%p785) target = $region44
      $region43: #{tpu_custom_call.1} parent=5 // pred_region
        %s788 = ssub.s32 %s15, 2
        // Predicated region
        $region45: #{tpu_custom_call.1} parent=43 // pred_check
          %p789 = pneg %p112
        $region46: #{tpu_custom_call.1} parent=43 // pred_check_branch
          %791 = sbr.rel (%p789) target = $region48
        $region47: #{tpu_custom_call.1} parent=43 // pred_region
          %s792 = sand.u32 %s97, 1
          %s793 = scalar_lea.sflag [#allocation4], %s792
          %s794 = sand.u32 %s97, 1
          %s795 = smul.addr %s794, 512
          %s796 = scalar_lea.vmem [#allocation5], %s795
          %797 = dma.done %s793, 8192
        $region48: #{tpu_custom_call.1} parent=43 // pred_fallthru
          _
      $region44: #{tpu_custom_call.1} parent=5 // pred_fallthru
        _
    $region6: #{tpu_custom_call.1} parent=1 // loop_footer
      %s19 = sadd.s32 1, %s15
    $region7: #{tpu_custom_call.1} parent=1 // loop_footer_branch
      %14 = sbr.rel target = $region3
    $region8: #{tpu_custom_call.1} parent=1 // loop_exit
      _
    %798 = vsyncpa [#allocation3], 1
    %s799 = scalar_lea.sflag [#allocation3], 1
    %800 = vsyncpa %s799, 1
    %801 = vsyncpa [#allocation4], 1
    %s802 = scalar_lea.sflag [#allocation4], 1
    %803 = vsyncpa %s802, 1

</llo_original>
